<compile_context>
chip_gen: v6e
topology: v6e:2x2x1
jax: 0.10.0
libtpu: 0.0.40
codegen_flags: <defaults>
</compile_context>

<pallas_src>
import math

import jax
import jax.numpy as jnp
import numpy as np
from jax import lax
from jax.experimental import pallas as pl
from jax.experimental.pallas import tpu as pltpu


def _silu(x):
    return x * jax.nn.sigmoid(x)


def _layernorm(x, g, b, eps=1e-5):
    mu = jnp.mean(x, axis=-1, keepdims=True)
    var = jnp.mean((x - mu) ** 2, axis=-1, keepdims=True)
    return (x - mu) * lax.rsqrt(var + eps) * g + b


def make_trf_forward(S, E, FF):
    """Build a jitted forward(x, w_slab, c_slab) -> (S, 128) padded output."""
    R = ((S + 7) // 8) * 8  # sublane-aligned row stride of constant-slab blocks

    def blk(i):
        return slice(i * R, i * R + S)

    bf16 = jnp.bfloat16
    f32 = jnp.float32

    def kernel(x_ref, w_ref, c_ref, out_ref):
        # x = x + positional_embedding(arange(S).flip(0))  (rows pre-reversed)
        x0 = x_ref[...] + c_ref[blk(9), 0:E]

        xb = x0.astype(bf16)
        # Fused QKV projection; 1/sqrt(E) pre-folded into Q weights/bias.
        qkv = (jnp.dot(xb, w_ref[0:E, :], preferred_element_type=f32)
               + c_ref[blk(0), :])
        q = qkv[:, 0:E]
        k = qkv[:, E:2 * E]
        v = qkv[:, 2 * E:3 * E]
        # NOTE: the lane sub-range extracts above may lower to XLU rotates;
        # the XLU slot is idle here so they stay off the VPU/MXU critical path.

        # scores = q @ k^T (contract last dims, no k.T materialisation)
        scores = lax.dot_general(q.astype(bf16), k.astype(bf16),
                                 (((1,), (1,)), ((), ())),
                                 preferred_element_type=f32)
        # pack-time additive causal mask (0 where col<=row, -1e30 elsewhere)
        scores = scores + c_ref[blk(10), 0:S]

        # f32 softmax with EUP reciprocal for the denominator
        m = jnp.max(scores, axis=-1, keepdims=True)
        p = jnp.exp(scores - m)
        attn = p * pl.reciprocal(jnp.sum(p, axis=-1, keepdims=True), approx=True)

        ctx = jnp.dot(attn.astype(bf16), v.astype(bf16),
                      preferred_element_type=f32)
        attn_out = (jnp.dot(ctx.astype(bf16), w_ref[E:2 * E, 0:E],
                            preferred_element_type=f32)
                    + c_ref[blk(1), 0:E])

        # --- post-norm TransformerEncoderLayer (LN stats in f32) ---
        h = _layernorm(x0 + attn_out, c_ref[blk(2), 0:E], c_ref[blk(3), 0:E])
        ff_h = _silu(jnp.dot(h.astype(bf16), w_ref[2 * E:3 * E, 0:FF],
                             preferred_element_type=f32)
                     + c_ref[blk(4), 0:FF])
        ff = (jnp.dot(ff_h.astype(bf16), w_ref[3 * E:3 * E + FF, 0:E],
                      preferred_element_type=f32)
              + c_ref[blk(5), 0:E])
        h2 = _layernorm(h + ff, c_ref[blk(6), 0:E], c_ref[blk(7), 0:E])

        # --- outer residual and final Linear (output padded to 128 lanes) ---
        y = _silu(h2) + x0
        out_ref[...] = (jnp.dot(y.astype(bf16),
                                w_ref[3 * E + FF:4 * E + FF, :],
                                preferred_element_type=f32)
                        + c_ref[blk(8), :])

    vmem = pl.BlockSpec(memory_space=pltpu.MemorySpace.VMEM)

    @jax.jit
    def fwd(x, w_slab, c_slab):
        # Returns the lane-dense (S, 128) padded result (columns >= NOUT are
        # zero). Consumers should slice [:, :NOUT] inside their own jit so no
        # extra tiny XLA dispatch sits on the kernel's critical path.
        return pl.pallas_call(
            kernel,
            out_shape=jax.ShapeDtypeStruct((S, 128), jnp.float32),
            in_specs=[vmem, vmem, vmem],
            out_specs=vmem,
        )(x, w_slab, c_slab)

    return fwd


def pack_params(params, S, E, FF, NOUT):
    """One-time packing of all parameters + constants into two lane-dense slabs."""
    scale = 1.0 / math.sqrt(E)

    # ---- weight slab (bf16): every matmul RHS, 128 lanes wide ----
    w = np.zeros((4 * E + FF, 128), np.float32)
    w[0:E, 0:E] = np.asarray(params["wq"]) * scale            # Q (pre-scaled)
    w[0:E, E:2 * E] = np.asarray(params["wk"])                 # K
    w[0:E, 2 * E:3 * E] = np.asarray(params["wv"])             # V
    w[E:2 * E, 0:E] = np.asarray(params["wo"])                 # attn out proj
    w[2 * E:3 * E, 0:FF] = np.asarray(params["w1"])            # FFN in
    w[3 * E:3 * E + FF, 0:E] = np.asarray(params["w2"])        # FFN out
    w[3 * E + FF:4 * E + FF, 0:NOUT] = np.asarray(params["wf"])  # final linear
    w_slab = jnp.asarray(w, dtype=jnp.bfloat16)

    # ---- constant slab (f32): biases / LN params pre-broadcast to S rows,
    #      reversed positional rows, additive causal mask ----
    R = ((S + 7) // 8) * 8
    c = np.zeros((11 * R, 128), np.float32)

    def put(i, vec, lane0=0):
        v = np.asarray(vec, np.float32).reshape(-1)
        c[i * R:i * R + S, lane0:lane0 + v.shape[0]] = np.broadcast_to(
            v, (S, v.shape[0]))

    put(0, np.asarray(params["bq"]).reshape(-1) * scale, 0)    # Q bias (scaled)
    put(0, params["bk"], E)                                    # K bias
    put(0, params["bv"], 2 * E)                                # V bias
    put(1, params["bo"])
    put(2, params["ln1_g"])
    put(3, params["ln1_b"])
    put(4, params["b1"])
    put(5, params["b2"])
    put(6, params["ln2_g"])
    put(7, params["ln2_b"])
    put(8, params["bf"])
    # positional rows for arange(S).flip(0) == reversed first S rows
    c[9 * R:9 * R + S, 0:E] = np.asarray(params["pos_emb"][:S])[::-1]
    # additive causal mask: 0 where col <= row, -1e30 where col > row
    row = np.arange(S)[:, None]
    col = np.arange(S)[None, :]
    c[10 * R:10 * R + S, 0:S] = np.where(col <= row, 0.0, -1e30).astype(np.float32)

    c_slab = jnp.asarray(c)
    return w_slab, c_slab


def trf_ref(x, params):
    """Pure-JAX f32 reference with identical math (for validation)."""
    S, E = x.shape
    pos = params["pos_emb"][:S][::-1]
    x0 = x + pos
    q = x0 @ params["wq"] + params["bq"]
    k = x0 @ params["wk"] + params["bk"]
    v = x0 @ params["wv"] + params["bv"]
    scores = (q @ k.T) / math.sqrt(E)
    mask = np.tril(np.ones((S, S), dtype=bool))
    scores = jnp.where(jnp.asarray(mask), scores, -1e30)
    attn = jax.nn.softmax(scores, axis=-1)
    attn_out = (attn @ v) @ params["wo"] + params["bo"]

    def ln(t, g, b, eps=1e-5):
        mu = jnp.mean(t, axis=-1, keepdims=True)
        var = jnp.mean((t - mu) ** 2, axis=-1, keepdims=True)
        return (t - mu) / jnp.sqrt(var + eps) * g + b

    h = ln(x0 + attn_out, params["ln1_g"], params["ln1_b"])
    ff = jax.nn.silu(h @ params["w1"] + params["b1"]) @ params["w2"] + params["b2"]
    h2 = ln(h + ff, params["ln2_g"], params["ln2_b"])
    y = jax.nn.silu(h2) + x0
    return y @ params["wf"] + params["bf"]


if __name__ == "__main__":
    # Small shapes consistent with the module: seq=8, input_size(d_model)=32,
    # dim_feedforward=64, num_output=8, max_len=252, nhead=1, num_layers=1.
    S, E, FF, NOUT, MAXLEN = 8, 32, 64, 8, 252

    key = jax.random.PRNGKey(0)
    keys = jax.random.split(key, 16)

    def u(k, shape, s=0.1):
        return jax.random.uniform(k, shape, jnp.float32, -s, s)

    params = dict(
        pos_emb=0.1 * jax.random.normal(keys[0], (MAXLEN, E), jnp.float32),
        wq=u(keys[1], (E, E)), bq=u(keys[2], (1, E)),
        wk=u(keys[3], (E, E)), bk=u(keys[4], (1, E)),
        wv=u(keys[5], (E, E)), bv=u(keys[6], (1, E)),
        wo=u(keys[7], (E, E)), bo=u(keys[8], (1, E)),
        ln1_g=jnp.ones((1, E), jnp.float32), ln1_b=jnp.zeros((1, E), jnp.float32),
        w1=u(keys[9], (E, FF)), b1=u(keys[10], (1, FF)),
        w2=u(keys[11], (FF, E)), b2=u(keys[12], (1, E)),
        ln2_g=jnp.ones((1, E), jnp.float32), ln2_b=jnp.zeros((1, E), jnp.float32),
        wf=u(keys[13], (E, NOUT)), bf=u(keys[14], (1, NOUT)),
    )
    x = jax.random.normal(keys[15], (S, E), jnp.float32)

    # One-time packing (build-time, not per-call glue).
    w_slab, c_slab = pack_params(params, S, E, FF, NOUT)
    trf_forward = make_trf_forward(S, E, FF)

    out_padded = jax.block_until_ready(trf_forward(x, w_slab, c_slab))
    assert out_padded.shape == (S, 128)

    # Test-harness-only slice (off the kernel path); real consumers slice
    # inside their own jit.
    out = np.asarray(out_padded)[:, :NOUT]
    ref = np.asarray(trf_ref(x, params))

    # bf16 matmul operands + approx softmax reciprocal -> ~1e-3..1e-2 abs error
    # vs the pure-f32 reference at these magnitudes.
    np.testing.assert_allclose(out, ref, rtol=2e-2, atol=2e-2)
    print("KERNEL_OK")
</pallas_src>

<mosaic_0001>
module attributes {stable_mosaic.version = 11 : i64} {
  func.func @kernel(%arg0: memref<8x32xf32, #tpu.memory_space<vmem>>, %arg1: memref<192x128xbf16, #tpu.memory_space<vmem>>, %arg2: memref<88x128xf32, #tpu.memory_space<vmem>>, %arg3: memref<8x128xf32, #tpu.memory_space<vmem>>) attributes {dimension_semantics = [], scalar_prefetch = 0 : i64, scratch_operands = 0 : i64, tpu.core_type = #tpu.core_type<tc>} {
    %c0 = arith.constant 0 : index
    %c0_0 = arith.constant 0 : index
    %0 = vector.load %arg0[%c0, %c0_0] : memref<8x32xf32, #tpu.memory_space<vmem>>, vector<8x32xf32>
    %c72 = arith.constant 72 : index
    %c0_1 = arith.constant 0 : index
    %1 = vector.load %arg2[%c72, %c0_1] : memref<88x128xf32, #tpu.memory_space<vmem>>, vector<8x32xf32>
    %2 = arith.addf %0, %1 : vector<8x32xf32>
    %3 = arith.truncf %2 : vector<8x32xf32> to vector<8x32xbf16>
    %c0_2 = arith.constant 0 : index
    %c0_3 = arith.constant 0 : index
    %4 = vector.load %arg1[%c0_2, %c0_3] : memref<192x128xbf16, #tpu.memory_space<vmem>>, vector<32x128xbf16>
    %cst = arith.constant dense<0.000000e+00> : vector<8x128xf32>
    %5 = tpu.matmul %3, %4, %cst {dimension_numbers = #tpu.dot_dimension_numbers<[1], [0], [0], [1], [0, 0, 1, 1], [], []>} : vector<8x32xbf16>, vector<32x128xbf16>, vector<8x128xf32> -> vector<8x128xf32>
    %c0_4 = arith.constant 0 : index
    %c0_5 = arith.constant 0 : index
    %6 = vector.load %arg2[%c0_4, %c0_5] : memref<88x128xf32, #tpu.memory_space<vmem>>, vector<8x128xf32>
    %7 = arith.addf %5, %6 : vector<8x128xf32>
    %8 = vector.extract_strided_slice %7 {offsets = [0, 0], sizes = [8, 32], strides = [1, 1]} : vector<8x128xf32> to vector<8x32xf32>
    %9 = vector.extract_strided_slice %7 {offsets = [0, 32], sizes = [8, 32], strides = [1, 1]} : vector<8x128xf32> to vector<8x32xf32>
    %10 = vector.extract_strided_slice %7 {offsets = [0, 64], sizes = [8, 32], strides = [1, 1]} : vector<8x128xf32> to vector<8x32xf32>
    %11 = arith.truncf %8 : vector<8x32xf32> to vector<8x32xbf16>
    %12 = arith.truncf %9 : vector<8x32xf32> to vector<8x32xbf16>
    %cst_6 = arith.constant dense<0.000000e+00> : vector<8x8xf32>
    %13 = tpu.matmul %11, %12, %cst_6 {dimension_numbers = #tpu.dot_dimension_numbers<[1], [1], [0], [0], [0, 0, 1, 0], [], []>} : vector<8x32xbf16>, vector<8x32xbf16>, vector<8x8xf32> -> vector<8x8xf32>
    %c80 = arith.constant 80 : index
    %c0_7 = arith.constant 0 : index
    %14 = vector.load %arg2[%c80, %c0_7] : memref<88x128xf32, #tpu.memory_space<vmem>>, vector<8x8xf32>
    %15 = arith.addf %13, %14 : vector<8x8xf32>
    %cst_8 = arith.constant dense<0xFF800000> : vector<8xf32>
    %16 = vector.multi_reduction <maximumf>, %15, %cst_8 [1] : vector<8x8xf32> to vector<8xf32>
    %17 = vector.shape_cast %16 : vector<8xf32> to vector<8x1xf32>
    %18 = vector.broadcast %17 : vector<8x1xf32> to vector<8x8xf32>
    %19 = arith.subf %15, %18 : vector<8x8xf32>
    %20 = math.exp %19 : vector<8x8xf32>
    %cst_9 = arith.constant dense<0.000000e+00> : vector<8xf32>
    %21 = vector.multi_reduction <add>, %20, %cst_9 [1] : vector<8x8xf32> to vector<8xf32>
    %22 = vector.shape_cast %21 : vector<8xf32> to vector<8x1xf32>
    %23 = tpu.reciprocal %22 {approx = true} : vector<8x1xf32> -> vector<8x1xf32>
    %24 = vector.broadcast %23 : vector<8x1xf32> to vector<8x8xf32>
    %25 = arith.mulf %20, %24 : vector<8x8xf32>
    %26 = arith.truncf %25 : vector<8x8xf32> to vector<8x8xbf16>
    %27 = arith.truncf %10 : vector<8x32xf32> to vector<8x32xbf16>
    %cst_10 = arith.constant dense<0.000000e+00> : vector<8x32xf32>
    %28 = tpu.matmul %26, %27, %cst_10 {dimension_numbers = #tpu.dot_dimension_numbers<[1], [0], [0], [1], [0, 0, 1, 1], [], []>} : vector<8x8xbf16>, vector<8x32xbf16>, vector<8x32xf32> -> vector<8x32xf32>
    %29 = arith.truncf %28 : vector<8x32xf32> to vector<8x32xbf16>
    %c32 = arith.constant 32 : index
    %c0_11 = arith.constant 0 : index
    %30 = vector.load %arg1[%c32, %c0_11] : memref<192x128xbf16, #tpu.memory_space<vmem>>, vector<32x32xbf16>
    %cst_12 = arith.constant dense<0.000000e+00> : vector<8x32xf32>
    %31 = tpu.matmul %29, %30, %cst_12 {dimension_numbers = #tpu.dot_dimension_numbers<[1], [0], [0], [1], [0, 0, 1, 1], [], []>} : vector<8x32xbf16>, vector<32x32xbf16>, vector<8x32xf32> -> vector<8x32xf32>
    %c8 = arith.constant 8 : index
    %c0_13 = arith.constant 0 : index
    %32 = vector.load %arg2[%c8, %c0_13] : memref<88x128xf32, #tpu.memory_space<vmem>>, vector<8x32xf32>
    %33 = arith.addf %31, %32 : vector<8x32xf32>
    %34 = arith.addf %2, %33 : vector<8x32xf32>
    %c16 = arith.constant 16 : index
    %c0_14 = arith.constant 0 : index
    %35 = vector.load %arg2[%c16, %c0_14] : memref<88x128xf32, #tpu.memory_space<vmem>>, vector<8x32xf32>
    %c24 = arith.constant 24 : index
    %c0_15 = arith.constant 0 : index
    %36 = vector.load %arg2[%c24, %c0_15] : memref<88x128xf32, #tpu.memory_space<vmem>>, vector<8x32xf32>
    %cst_16 = arith.constant dense<0.000000e+00> : vector<8xf32>
    %37 = vector.multi_reduction <add>, %34, %cst_16 [1] : vector<8x32xf32> to vector<8xf32>
    %38 = vector.shape_cast %37 : vector<8xf32> to vector<8x1xf32>
    %cst_17 = arith.constant 3.200000e+01 : f32
    %39 = vector.broadcast %cst_17 : f32 to vector<8x1xf32>
    %40 = arith.divf %38, %39 : vector<8x1xf32>
    %41 = vector.broadcast %40 : vector<8x1xf32> to vector<8x32xf32>
    %42 = arith.subf %34, %41 : vector<8x32xf32>
    %43 = arith.mulf %42, %42 : vector<8x32xf32>
    %cst_18 = arith.constant dense<0.000000e+00> : vector<8xf32>
    %44 = vector.multi_reduction <add>, %43, %cst_18 [1] : vector<8x32xf32> to vector<8xf32>
    %45 = vector.shape_cast %44 : vector<8xf32> to vector<8x1xf32>
    %cst_19 = arith.constant 3.200000e+01 : f32
    %46 = vector.broadcast %cst_19 : f32 to vector<8x1xf32>
    %47 = arith.divf %45, %46 : vector<8x1xf32>
    %48 = vector.broadcast %40 : vector<8x1xf32> to vector<8x32xf32>
    %49 = arith.subf %34, %48 : vector<8x32xf32>
    %cst_20 = arith.constant 9.99999974E-6 : f32
    %50 = vector.broadcast %cst_20 : f32 to vector<8x1xf32>
    %51 = arith.addf %47, %50 : vector<8x1xf32>
    %52 = math.rsqrt %51 : vector<8x1xf32>
    %53 = vector.broadcast %52 : vector<8x1xf32> to vector<8x32xf32>
    %54 = arith.mulf %49, %53 : vector<8x32xf32>
    %55 = arith.mulf %54, %35 : vector<8x32xf32>
    %56 = arith.addf %55, %36 : vector<8x32xf32>
    %57 = arith.truncf %56 : vector<8x32xf32> to vector<8x32xbf16>
    %c64 = arith.constant 64 : index
    %c0_21 = arith.constant 0 : index
    %58 = vector.load %arg1[%c64, %c0_21] : memref<192x128xbf16, #tpu.memory_space<vmem>>, vector<32x64xbf16>
    %cst_22 = arith.constant dense<0.000000e+00> : vector<8x64xf32>
    %59 = tpu.matmul %57, %58, %cst_22 {dimension_numbers = #tpu.dot_dimension_numbers<[1], [0], [0], [1], [0, 0, 1, 1], [], []>} : vector<8x32xbf16>, vector<32x64xbf16>, vector<8x64xf32> -> vector<8x64xf32>
    %c32_23 = arith.constant 32 : index
    %c0_24 = arith.constant 0 : index
    %60 = vector.load %arg2[%c32_23, %c0_24] : memref<88x128xf32, #tpu.memory_space<vmem>>, vector<8x64xf32>
    %61 = arith.addf %59, %60 : vector<8x64xf32>
    %62 = arith.negf %61 : vector<8x64xf32>
    %63 = math.exp %62 : vector<8x64xf32>
    %cst_25 = arith.constant 1.000000e+00 : f32
    %64 = vector.broadcast %cst_25 : f32 to vector<8x64xf32>
    %65 = arith.addf %64, %63 : vector<8x64xf32>
    %66 = arith.divf %64, %65 : vector<8x64xf32>
    %67 = arith.mulf %61, %66 : vector<8x64xf32>
    %68 = arith.truncf %67 : vector<8x64xf32> to vector<8x64xbf16>
    %c96 = arith.constant 96 : index
    %c0_26 = arith.constant 0 : index
    %69 = vector.load %arg1[%c96, %c0_26] : memref<192x128xbf16, #tpu.memory_space<vmem>>, vector<64x32xbf16>
    %cst_27 = arith.constant dense<0.000000e+00> : vector<8x32xf32>
    %70 = tpu.matmul %68, %69, %cst_27 {dimension_numbers = #tpu.dot_dimension_numbers<[1], [0], [0], [1], [0, 0, 1, 1], [], []>} : vector<8x64xbf16>, vector<64x32xbf16>, vector<8x32xf32> -> vector<8x32xf32>
    %c40 = arith.constant 40 : index
    %c0_28 = arith.constant 0 : index
    %71 = vector.load %arg2[%c40, %c0_28] : memref<88x128xf32, #tpu.memory_space<vmem>>, vector<8x32xf32>
    %72 = arith.addf %70, %71 : vector<8x32xf32>
    %73 = arith.addf %56, %72 : vector<8x32xf32>
    %c48 = arith.constant 48 : index
    %c0_29 = arith.constant 0 : index
    %74 = vector.load %arg2[%c48, %c0_29] : memref<88x128xf32, #tpu.memory_space<vmem>>, vector<8x32xf32>
    %c56 = arith.constant 56 : index
    %c0_30 = arith.constant 0 : index
    %75 = vector.load %arg2[%c56, %c0_30] : memref<88x128xf32, #tpu.memory_space<vmem>>, vector<8x32xf32>
    %cst_31 = arith.constant dense<0.000000e+00> : vector<8xf32>
    %76 = vector.multi_reduction <add>, %73, %cst_31 [1] : vector<8x32xf32> to vector<8xf32>
    %77 = vector.shape_cast %76 : vector<8xf32> to vector<8x1xf32>
    %cst_32 = arith.constant 3.200000e+01 : f32
    %78 = vector.broadcast %cst_32 : f32 to vector<8x1xf32>
    %79 = arith.divf %77, %78 : vector<8x1xf32>
    %80 = vector.broadcast %79 : vector<8x1xf32> to vector<8x32xf32>
    %81 = arith.subf %73, %80 : vector<8x32xf32>
    %82 = arith.mulf %81, %81 : vector<8x32xf32>
    %cst_33 = arith.constant dense<0.000000e+00> : vector<8xf32>
    %83 = vector.multi_reduction <add>, %82, %cst_33 [1] : vector<8x32xf32> to vector<8xf32>
    %84 = vector.shape_cast %83 : vector<8xf32> to vector<8x1xf32>
    %cst_34 = arith.constant 3.200000e+01 : f32
    %85 = vector.broadcast %cst_34 : f32 to vector<8x1xf32>
    %86 = arith.divf %84, %85 : vector<8x1xf32>
    %87 = vector.broadcast %79 : vector<8x1xf32> to vector<8x32xf32>
    %88 = arith.subf %73, %87 : vector<8x32xf32>
    %cst_35 = arith.constant 9.99999974E-6 : f32
    %89 = vector.broadcast %cst_35 : f32 to vector<8x1xf32>
    %90 = arith.addf %86, %89 : vector<8x1xf32>
    %91 = math.rsqrt %90 : vector<8x1xf32>
    %92 = vector.broadcast %91 : vector<8x1xf32> to vector<8x32xf32>
    %93 = arith.mulf %88, %92 : vector<8x32xf32>
    %94 = arith.mulf %93, %74 : vector<8x32xf32>
    %95 = arith.addf %94, %75 : vector<8x32xf32>
    %96 = arith.negf %95 : vector<8x32xf32>
    %97 = math.exp %96 : vector<8x32xf32>
    %cst_36 = arith.constant 1.000000e+00 : f32
    %98 = vector.broadcast %cst_36 : f32 to vector<8x32xf32>
    %99 = arith.addf %98, %97 : vector<8x32xf32>
    %100 = arith.divf %98, %99 : vector<8x32xf32>
    %101 = arith.mulf %95, %100 : vector<8x32xf32>
    %102 = arith.addf %101, %2 : vector<8x32xf32>
    %103 = arith.truncf %102 : vector<8x32xf32> to vector<8x32xbf16>
    %c160 = arith.constant 160 : index
    %c0_37 = arith.constant 0 : index
    %104 = vector.load %arg1[%c160, %c0_37] : memref<192x128xbf16, #tpu.memory_space<vmem>>, vector<32x128xbf16>
    %cst_38 = arith.constant dense<0.000000e+00> : vector<8x128xf32>
    %105 = tpu.matmul %103, %104, %cst_38 {dimension_numbers = #tpu.dot_dimension_numbers<[1], [0], [0], [1], [0, 0, 1, 1], [], []>} : vector<8x32xbf16>, vector<32x128xbf16>, vector<8x128xf32> -> vector<8x128xf32>
    %c64_39 = arith.constant 64 : index
    %c0_40 = arith.constant 0 : index
    %106 = vector.load %arg2[%c64_39, %c0_40] : memref<88x128xf32, #tpu.memory_space<vmem>>, vector<8x128xf32>
    %107 = arith.addf %105, %106 : vector<8x128xf32>
    %c0_41 = arith.constant 0 : index
    %c0_42 = arith.constant 0 : index
    %108 = vector.load %arg3[%c0_41, %c0_42] : memref<8x128xf32, #tpu.memory_space<vmem>>, vector<8x128xf32>
    tpu.vector_store %arg3[%c0_41, %c0_42], %107 {strides = array<i32>} : memref<8x128xf32, #tpu.memory_space<vmem>>, vector<8x128xf32>,
    return
  }
}

</mosaic_0001>

<llo_original>
// kernel: fwd.1
$region0: #{fwd.1}
  #allocation0 [shape = 'u32[]', space=smem, size = 0x4, offset = 0x4, fixed_abs, tag = 'smem constant byte address 0x4 - core index']
  #allocation1 [shape = 'u32[144,128]{1,0:T(1,128)}', space=vmem, size = 0x12000, scoped, tag = 'internal scratch']
  %s0 = inlined_call_operand.hbm [shape: f32[8,32], index: 0, kind: input, shape index: {}]
  %s1 = inlined_call_operand.hbm [shape: bf16[192,128], index: 1, kind: input, shape index: {}]
  %s2 = inlined_call_operand.hbm [shape: f32[88,128], index: 2, kind: input, shape index: {}]
  %s3 = inlined_call_operand.hbm [shape: f32[8,128], index: 3, kind: output, shape index: {}]
  %s4 = sld [smem:[#allocation0]]
  $region34: #{fwd.1} parent=0
    _
  %s6 = ssub.s32 1, %s4
  %s7 = scalar_select 0, %s6, %s4
  $region1: #{fwd.1} parent=0
    #allocation2 [shape = 'u8[4096]{0}', space=vmem, size = 0x1000, scoped, tag = 'input window, operand 0, single buffered']
    #allocation3 [shape = 's32[1]{0}', space=sflag, size = 0x4, scoped, tag = 'scoped memory for fwd.1']
    #allocation4 [shape = 's32[1]{0}', space=sflag, size = 0x4, scoped, tag = 'scoped memory for fwd.1']
    #allocation5 [shape = 'u8[49152]{0}', space=vmem, size = 0xc000, scoped, tag = 'input window, operand 1, single buffered']
    #allocation6 [shape = 's32[1]{0}', space=sflag, size = 0x4, scoped, tag = 'scoped memory for fwd.1']
    #allocation7 [shape = 'u8[45056]{0}', space=vmem, size = 0xb000, scoped, tag = 'input window, operand 2, single buffered']
    #allocation8 [shape = 'u8[4096]{0}', space=vmem, size = 0x1000, scoped, tag = 'output window, operand 0, single buffered']
    %8 = vsyncpa [#allocation3], 0
    %9 = vsyncpa [#allocation6], 0
    %10 = vsyncpa [#allocation4], 0
    // Predicated region
    $region2: #{fwd.1} parent=1 // pred_check
      _
    $region3: #{fwd.1} parent=1 // pred_check_branch
      %12 = sbr.rel (0) target = $region5
    $region4: #{fwd.1} parent=1 // pred_region
      %s14 = ssub.s32 128, 128
      %15 = vsyncadd [#allocation3], %s14
      %s17 = sshll.u32 [#allocation2], 4
      %s18 = int_to_ptr.vmem [resolvable:$true] %s17
      %20 = dma.hbm_to_vmem [thread:$0]  %s0, 128, %s18, [#allocation3]
    $region5: #{fwd.1} parent=1 // pred_fallthru
      _
    // Predicated region
    $region6: #{fwd.1} parent=1 // pred_check
      _
    $region7: #{fwd.1} parent=1 // pred_check_branch
      %22 = sbr.rel (0) target = $region9
    $region8: #{fwd.1} parent=1 // pred_region
      %s24 = ssub.s32 1536, 1536
      %25 = vsyncadd [#allocation6], %s24
      %s26 = sshll.u32 [#allocation5], 4
      %s27 = int_to_ptr.vmem [resolvable:$true] %s26
      %32 = dma.hbm_to_vmem [thread:$0]  %s1, 1536, %s27, [#allocation6], 64, 64, 4
    $region9: #{fwd.1} parent=1 // pred_fallthru
      _
    // Predicated region
    $region10: #{fwd.1} parent=1 // pred_check
      _
    $region11: #{fwd.1} parent=1 // pred_check_branch
      %34 = sbr.rel (0) target = $region13
    $region12: #{fwd.1} parent=1 // pred_region
      %s36 = ssub.s32 1408, 1408
      %37 = vsyncadd [#allocation6], %s36
      %s38 = sshll.u32 [#allocation7], 4
      %s39 = int_to_ptr.vmem [resolvable:$true] %s38
      %44 = dma.hbm_to_vmem [thread:$0]  %s2, 1408, %s39, [#allocation6], 128, 128, 8
    $region13: #{fwd.1} parent=1 // pred_fallthru
      _
    // Predicated region
    $region14: #{fwd.1} parent=1 // pred_check
      _
    $region15: #{fwd.1} parent=1 // pred_check_branch
      %46 = sbr.rel (0) target = $region17
    $region16: #{fwd.1} parent=1 // pred_region
      %47 = dma.done [#allocation3], 128
    $region17: #{fwd.1} parent=1 // pred_fallthru
      _
    // Predicated region
    $region18: #{fwd.1} parent=1 // pred_check
      _
    $region19: #{fwd.1} parent=1 // pred_check_branch
      %49 = sbr.rel (0) target = $region21
    $region20: #{fwd.1} parent=1 // pred_region
      %50 = dma.done [#allocation6], 1536
    $region21: #{fwd.1} parent=1 // pred_fallthru
      _
    // Predicated region
    $region22: #{fwd.1} parent=1 // pred_check
      _
    $region23: #{fwd.1} parent=1 // pred_check_branch
      %52 = sbr.rel (0) target = $region25
    $region24: #{fwd.1} parent=1 // pred_region
      %53 = dma.done [#allocation6], 1408
    $region25: #{fwd.1} parent=1 // pred_fallthru
      _
    %v55 = vld [vmem:[#allocation2] sm:$0xff]
    %v56 = vld [vmem:[#allocation7 + $0x48] sm:$0xff]
    %v57 = vadd.f32 %v55, %v56
    %v58 = vpack.c.bf16 %v57, %v57
    %v59 = vld [vmem:[#allocation5] sm:$0xf]
    %v60 = vld [vmem:[#allocation5 + $0x4] sm:$0xf]
    %v61 = vld [vmem:[#allocation5 + $0x8] sm:$0xf]
    %v62 = vld [vmem:[#allocation5 + $0xc] sm:$0xf]
    %v63 = vld [vmem:[#allocation7] sm:$0xff]
    %v68 = vunpack.c.l.b16 %v59
    %v69 = vunpack.c.l.b16 %v60
    %v70 = vunpack.c.l.b16 %v61
    %v71 = vunpack.c.l.b16 %v62
    %v72 = vpack.c.b16 %v69, %v68
    %v73 = vpack.c.b16 %v71, %v70
    %vm76 = vcmask 261120
    %v78 = vsel %vm76, %v58, 0
    %80 = vmatprep.subr.bf16.mxu0 0
    %81 = vmatpush1.bf16.msra.mxu0 0
    %82 = vmatprep.subr.bf16.mxu0 0
    %83 = vmatpush1.bf16.msra.mxu0 0
    %84 = vmatprep.subr.bf16.mxu0 0
    %85 = vmatpush1.bf16.msra.mxu0 0
    %86 = vmatprep.subr.bf16.mxu0 0
    %87 = vmatpush1.bf16.msra.mxu0 0
    %88 = vmatprep.subr.bf16.mxu0 0
    %89 = vmatpush1.bf16.msra.mxu0 0
    %90 = vmatprep.subr.bf16.mxu0 0
    %91 = vmatpush1.bf16.msra.mxu0 0
    %92 = vmatprep.subr.bf16.mxu0 0
    %93 = vmatpush1.bf16.msra.mxu0 %v73
    %94 = vmatprep.subr.bf16.mxu0 0
    %95 = vmatpush1.bf16.msra.mxu0 %v72
    %96 = vmatprep.subr.bf16.mxu0 0
    %97 = vmatpush2.bf16.msra.mxu0 0
    %98 = vmatprep.subr.bf16.mxu0 0
    %99 = vmatpush2.bf16.msra.mxu0 0
    %100 = vmatprep.subr.bf16.mxu0 0
    %101 = vmatpush2.bf16.msra.mxu0 0
    %102 = vmatprep.subr.bf16.mxu0 0
    %103 = vmatpush2.bf16.msra.mxu0 0
    %104 = vmatprep.subr.bf16.mxu0 0
    %105 = vmatpush2.bf16.msra.mxu0 0
    %106 = vmatprep.subr.bf16.mxu0 0
    %107 = vmatpush2.bf16.msra.mxu0 0
    %108 = vmatprep.subr.bf16.mxu0 0
    %109 = vmatpush2.bf16.msra.mxu0 0
    %110 = vmatprep.subr.bf16.mxu0 0
    %111 = vmatpush2.bf16.msra.mxu0 0
    %112 = vmatprep.mubr.bf16.mxu0 0
    %113 = vmatmul.mubr.bf16.gmra.mxu0 %v78
    %v114 = vpop.f32.mrf.mxu0
    %v115 = vadd.f32 %v63, %v114
    %v116 = vpop.f32.mrf.mxu0
    %v117 = vpop.f32.mrf.mxu0
    %v118 = vpop.f32.mrf.mxu0
    %119 = vdwg.mxu0
    %v120 = vpack.c.bf16 %v115, %v115
    %v121 = vld [vmem:[#allocation7 + $0x50] sm:$0xff]
    %123 = vrot.lane.b32.xlu0 %v120, 96
    %v124 = vpop.permute.xlu0 %123
    %v126 = vsel %vm76, %v120, 0
    %v129 = vsel %vm76, %v124, 0
    %131 = vmatprep.subr.bf16.mxu0 0
    %132 = vmatpush1.bf16.xpose.msra.mxu0 0
    %133 = vmatprep.subr.bf16.mxu0 0
    %134 = vmatpush1.bf16.xpose.msra.mxu0 0
    %135 = vmatprep.subr.bf16.mxu0 0
    %136 = vmatpush1.bf16.xpose.msra.mxu0 0
    %137 = vmatprep.subr.bf16.mxu0 0
    %138 = vmatpush1.bf16.xpose.msra.mxu0 0
    %139 = vmatprep.subr.bf16.mxu0 0
    %140 = vmatpush1.bf16.xpose.msra.mxu0 0
    %141 = vmatprep.subr.bf16.mxu0 0
    %142 = vmatpush1.bf16.xpose.msra.mxu0 0
    %143 = vmatprep.subr.bf16.mxu0 0
    %144 = vmatpush1.bf16.xpose.msra.mxu0 0
    %145 = vmatprep.subr.bf16.mxu0 0
    %146 = vmatpush1.bf16.xpose.msra.mxu0 %v129
    %147 = vmatprep.subr.bf16.mxu0 0
    %148 = vmatpush2.bf16.xpose.msra.mxu0 0
    %149 = vmatprep.subr.bf16.mxu0 0
    %150 = vmatpush2.bf16.xpose.msra.mxu0 0
    %151 = vmatprep.subr.bf16.mxu0 0
    %152 = vmatpush2.bf16.xpose.msra.mxu0 0
    %153 = vmatprep.subr.bf16.mxu0 0
    %154 = vmatpush2.bf16.xpose.msra.mxu0 0
    %155 = vmatprep.subr.bf16.mxu0 0
    %156 = vmatpush2.bf16.xpose.msra.mxu0 0
    %157 = vmatprep.subr.bf16.mxu0 0
    %158 = vmatpush2.bf16.xpose.msra.mxu0 0
    %159 = vmatprep.subr.bf16.mxu0 0
    %160 = vmatpush2.bf16.xpose.msra.mxu0 0
    %161 = vmatprep.subr.bf16.mxu0 0
    %162 = vmatpush2.bf16.xpose.msra.mxu0 0
    %163 = vmatprep.mubr.bf16.mxu0 0
    %164 = vmatmul.mubr.bf16.gmra.mxu0 %v126
    %v165 = vpop.f32.mrf.mxu0
    %v166 = vadd.f32 %v121, %v165
    %v167 = vpop.f32.mrf.mxu0
    %v168 = vpop.f32.mrf.mxu0
    %v169 = vpop.f32.mrf.mxu0
    %170 = vdwg.mxu0
    %vm171 = vcmask 64512
    %v172 = vsel %vm171, %v166, -inf
    %173 = vmax.xlane.f32.xlu0 %v172
    %v174 = vpop.xlane.xlu0 %173
    %v175 = vsub.f32 %v166, %v174
    %v176 = vmul.f32 %v175, 1.442695
    %v177 = vpow.pop %v176
    %v178 = vsel %vm171, %v177, 0.0
    %179 = vadd.xlane.f32.xlu0 %v178
    %v180 = vpop.xlane.xlu0 %179
    %v181 = vrcp.pop %v180
    %v182 = vmul.f32 %v177, %v181
    %v183 = vpack.c.bf16 %v182, %v182
    %184 = vrot.lane.b32.xlu0 %v120, 64
    %v185 = vpop.permute.xlu0 %184
    %v187 = vsel %vm171, %v183, 0
    %vm189 = vcmask 1043456
    %v191 = vsel %vm189, %v185, 0
    %193 = vmatprep.subr.bf16.mxu0 0
    %194 = vmatpush1.bf16.msra.mxu0 0
    %195 = vmatprep.subr.bf16.mxu0 0
    %196 = vmatpush1.bf16.msra.mxu0 0
    %197 = vmatprep.subr.bf16.mxu0 0
    %198 = vmatpush1.bf16.msra.mxu0 0
    %199 = vmatprep.subr.bf16.mxu0 0
    %200 = vmatpush1.bf16.msra.mxu0 0
    %201 = vmatprep.subr.bf16.mxu0 0
    %202 = vmatpush1.bf16.msra.mxu0 0
    %203 = vmatprep.subr.bf16.mxu0 0
    %204 = vmatpush1.bf16.msra.mxu0 0
    %205 = vmatprep.subr.bf16.mxu0 0
    %206 = vmatpush1.bf16.msra.mxu0 0
    %207 = vmatprep.subr.bf16.mxu0 0
    %208 = vmatpush1.bf16.msra.mxu0 %v191
    %209 = vmatprep.subr.bf16.mxu0 0
    %210 = vmatpush2.bf16.msra.mxu0 0
    %211 = vmatprep.subr.bf16.mxu0 0
    %212 = vmatpush2.bf16.msra.mxu0 0
    %213 = vmatprep.subr.bf16.mxu0 0
    %214 = vmatpush2.bf16.msra.mxu0 0
    %215 = vmatprep.subr.bf16.mxu0 0
    %216 = vmatpush2.bf16.msra.mxu0 0
    %217 = vmatprep.subr.bf16.mxu0 0
    %218 = vmatpush2.bf16.msra.mxu0 0
    %219 = vmatprep.subr.bf16.mxu0 0
    %220 = vmatpush2.bf16.msra.mxu0 0
    %221 = vmatprep.subr.bf16.mxu0 0
    %222 = vmatpush2.bf16.msra.mxu0 0
    %223 = vmatprep.subr.bf16.mxu0 0
    %224 = vmatpush2.bf16.msra.mxu0 0
    %225 = vmatprep.mubr.bf16.mxu0 0
    %226 = vmatmul.mubr.bf16.gmra.mxu0 %v187
    %v227 = vpop.f32.mrf.mxu0
    %v228 = vadd.f32 0.0, %v227
    %v229 = vpop.f32.mrf.mxu0
    %v230 = vpop.f32.mrf.mxu0
    %v231 = vpop.f32.mrf.mxu0
    %232 = vdwg.mxu0
    %v233 = vpack.c.bf16 %v228, %v228
    %v234 = vld [vmem:[#allocation5 + $0x10] sm:$0xf]
    %v235 = vld [vmem:[#allocation5 + $0x14] sm:$0xf]
    %v236 = vld [vmem:[#allocation5 + $0x18] sm:$0xf]
    %v237 = vld [vmem:[#allocation5 + $0x1c] sm:$0xf]
    %v238 = vld [vmem:[#allocation7 + $0x8] sm:$0xff]
    %v243 = vunpack.c.l.b16 %v234
    %v244 = vunpack.c.l.b16 %v235
    %v245 = vunpack.c.l.b16 %v236
    %v246 = vunpack.c.l.b16 %v237
    %v247 = vpack.c.b16 %v244, %v243
    %v248 = vpack.c.b16 %v246, %v245
    %v252 = vsel %vm76, %v233, 0
    %254 = vmatprep.subr.bf16.mxu0 0
    %255 = vmatpush1.bf16.msra.mxu0 0
    %256 = vmatprep.subr.bf16.mxu0 0
    %257 = vmatpush1.bf16.msra.mxu0 0
    %258 = vmatprep.subr.bf16.mxu0 0
    %259 = vmatpush1.bf16.msra.mxu0 0
    %260 = vmatprep.subr.bf16.mxu0 0
    %261 = vmatpush1.bf16.msra.mxu0 0
    %262 = vmatprep.subr.bf16.mxu0 0
    %263 = vmatpush1.bf16.msra.mxu0 0
    %264 = vmatprep.subr.bf16.mxu0 0
    %265 = vmatpush1.bf16.msra.mxu0 0
    %266 = vmatprep.subr.bf16.mxu0 0
    %267 = vmatpush1.bf16.msra.mxu0 %v248
    %268 = vmatprep.subr.bf16.mxu0 0
    %269 = vmatpush1.bf16.msra.mxu0 %v247
    %270 = vmatprep.subr.bf16.mxu0 0
    %271 = vmatpush2.bf16.msra.mxu0 0
    %272 = vmatprep.subr.bf16.mxu0 0
    %273 = vmatpush2.bf16.msra.mxu0 0
    %274 = vmatprep.subr.bf16.mxu0 0
    %275 = vmatpush2.bf16.msra.mxu0 0
    %276 = vmatprep.subr.bf16.mxu0 0
    %277 = vmatpush2.bf16.msra.mxu0 0
    %278 = vmatprep.subr.bf16.mxu0 0
    %279 = vmatpush2.bf16.msra.mxu0 0
    %280 = vmatprep.subr.bf16.mxu0 0
    %281 = vmatpush2.bf16.msra.mxu0 0
    %282 = vmatprep.subr.bf16.mxu0 0
    %283 = vmatpush2.bf16.msra.mxu0 0
    %284 = vmatprep.subr.bf16.mxu0 0
    %285 = vmatpush2.bf16.msra.mxu0 0
    %286 = vmatprep.mubr.bf16.mxu0 0
    %287 = vmatmul.mubr.bf16.gmra.mxu0 %v252
    %v288 = vpop.f32.mrf.mxu0
    %v289 = vadd.f32 %v238, %v288
    %v290 = vpop.f32.mrf.mxu0
    %v291 = vpop.f32.mrf.mxu0
    %v292 = vpop.f32.mrf.mxu0
    %293 = vdwg.mxu0
    %v294 = vadd.f32 %v57, %v289
    %v295 = vld [vmem:[#allocation7 + $0x10] sm:$0xff]
    %v296 = vld [vmem:[#allocation7 + $0x18] sm:$0xff]
    %v297 = vsel %vm76, %v294, 0.0
    %298 = vadd.xlane.f32.xlu0 %v297
    %v299 = vpop.xlane.xlu0 %298
    %v300 = vrcp.pop 32.0
    %v301 = vmul.f32 %v299, %v300
    %v302 = vsub.f32 %v294, %v301
    %v303 = vmul.f32 %v302, %v302
    %v304 = vsel %vm76, %v303, 0.0
    %305 = vadd.xlane.f32.xlu0 %v304
    %v306 = vpop.xlane.xlu0 %305
    %v307 = vmul.f32 %v306, %v300
    %v308 = vadd.f32 %v307, 1e-05
    %v309 = vrsqrt.pop %v308
    %v310 = vmul.f32 %v302, %v309
    %v311 = vmul.f32 %v310, %v295
    %v312 = vadd.f32 %v311, %v296
    %v313 = vpack.c.bf16 %v312, %v312
    %v314 = vld [vmem:[#allocation5 + $0x20] sm:$0xf]
    %v315 = vld [vmem:[#allocation5 + $0x24] sm:$0xf]
    %v316 = vld [vmem:[#allocation5 + $0x28] sm:$0xf]
    %v317 = vld [vmem:[#allocation5 + $0x2c] sm:$0xf]
    %v318 = vld [vmem:[#allocation7 + $0x20] sm:$0xff]
    %v323 = vunpack.c.l.b16 %v314
    %v324 = vunpack.c.l.b16 %v315
    %v325 = vunpack.c.l.b16 %v316
    %v326 = vunpack.c.l.b16 %v317
    %v327 = vpack.c.b16 %v324, %v323
    %v328 = vpack.c.b16 %v326, %v325
    %v332 = vsel %vm76, %v313, 0
    %334 = vmatprep.subr.bf16.mxu0 0
    %335 = vmatpush1.bf16.msra.mxu0 0
    %336 = vmatprep.subr.bf16.mxu0 0
    %337 = vmatpush1.bf16.msra.mxu0 0
    %338 = vmatprep.subr.bf16.mxu0 0
    %339 = vmatpush1.bf16.msra.mxu0 0
    %340 = vmatprep.subr.bf16.mxu0 0
    %341 = vmatpush1.bf16.msra.mxu0 0
    %342 = vmatprep.subr.bf16.mxu0 0
    %343 = vmatpush1.bf16.msra.mxu0 0
    %344 = vmatprep.subr.bf16.mxu0 0
    %345 = vmatpush1.bf16.msra.mxu0 0
    %346 = vmatprep.subr.bf16.mxu0 0
    %347 = vmatpush1.bf16.msra.mxu0 %v328
    %348 = vmatprep.subr.bf16.mxu0 0
    %349 = vmatpush1.bf16.msra.mxu0 %v327
    %350 = vmatprep.subr.bf16.mxu0 0
    %351 = vmatpush2.bf16.msra.mxu0 0
    %352 = vmatprep.subr.bf16.mxu0 0
    %353 = vmatpush2.bf16.msra.mxu0 0
    %354 = vmatprep.subr.bf16.mxu0 0
    %355 = vmatpush2.bf16.msra.mxu0 0
    %356 = vmatprep.subr.bf16.mxu0 0
    %357 = vmatpush2.bf16.msra.mxu0 0
    %358 = vmatprep.subr.bf16.mxu0 0
    %359 = vmatpush2.bf16.msra.mxu0 0
    %360 = vmatprep.subr.bf16.mxu0 0
    %361 = vmatpush2.bf16.msra.mxu0 0
    %362 = vmatprep.subr.bf16.mxu0 0
    %363 = vmatpush2.bf16.msra.mxu0 0
    %364 = vmatprep.subr.bf16.mxu0 0
    %365 = vmatpush2.bf16.msra.mxu0 0
    %366 = vmatprep.mubr.bf16.mxu0 0
    %367 = vmatmul.mubr.bf16.gmra.mxu0 %v332
    %v368 = vpop.f32.mrf.mxu0
    %v369 = vadd.f32 %v318, %v368
    %v370 = vpop.f32.mrf.mxu0
    %v371 = vpop.f32.mrf.mxu0
    %v372 = vpop.f32.mrf.mxu0
    %373 = vdwg.mxu0
    %v374 = vxor.u32 %v369, 2147483648
    %v375 = vmul.f32 %v374, 1.442695
    %v376 = vpow.pop %v375
    %v377 = vadd.f32 %v376, 1.0
    %v378 = vrcp.pop %v377
    %v379 = vmul.f32 1.0, %v378
    %v380 = vmul.f32 %v369, %v379
    %v381 = vpack.c.bf16 %v380, %v380
    %v382 = vld [vmem:[#allocation5 + $0x30] sm:$0xf]
    %v383 = vld [vmem:[#allocation5 + $0x34] sm:$0xf]
    %v384 = vld [vmem:[#allocation5 + $0x38] sm:$0xf]
    %v385 = vld [vmem:[#allocation5 + $0x3c] sm:$0xf]
    %v386 = vld [vmem:[#allocation5 + $0x40] sm:$0xf]
    %v387 = vld [vmem:[#allocation5 + $0x44] sm:$0xf]
    %v388 = vld [vmem:[#allocation5 + $0x48] sm:$0xf]
    %v389 = vld [vmem:[#allocation5 + $0x4c] sm:$0xf]
    %v390 = vld [vmem:[#allocation7 + $0x28] sm:$0xff]
    %v399 = vunpack.c.l.b16 %v382
    %v400 = vunpack.c.l.b16 %v383
    %v401 = vunpack.c.l.b16 %v384
    %v402 = vunpack.c.l.b16 %v385
    %v403 = vunpack.c.l.b16 %v386
    %v404 = vunpack.c.l.b16 %v387
    %v405 = vunpack.c.l.b16 %v388
    %v406 = vunpack.c.l.b16 %v389
    %v407 = vpack.c.b16 %v400, %v399
    %v408 = vpack.c.b16 %v402, %v401
    %v409 = vpack.c.b16 %v404, %v403
    %v410 = vpack.c.b16 %v406, %v405
    %vm415 = vcmask 523264
    %v417 = vsel %vm415, %v381, 0
    %419 = vmatprep.subr.bf16.mxu0 0
    %420 = vmatpush1.bf16.msra.mxu0 0
    %421 = vmatprep.subr.bf16.mxu0 0
    %422 = vmatpush1.bf16.msra.mxu0 0
    %423 = vmatprep.subr.bf16.mxu0 0
    %424 = vmatpush1.bf16.msra.mxu0 0
    %425 = vmatprep.subr.bf16.mxu0 0
    %426 = vmatpush1.bf16.msra.mxu0 0
    %427 = vmatprep.subr.bf16.mxu0 0
    %428 = vmatpush1.bf16.msra.mxu0 %v410
    %429 = vmatprep.subr.bf16.mxu0 0
    %430 = vmatpush1.bf16.msra.mxu0 %v409
    %431 = vmatprep.subr.bf16.mxu0 0
    %432 = vmatpush1.bf16.msra.mxu0 %v408
    %433 = vmatprep.subr.bf16.mxu0 0
    %434 = vmatpush1.bf16.msra.mxu0 %v407
    %435 = vmatprep.subr.bf16.mxu0 0
    %436 = vmatpush2.bf16.msra.mxu0 0
    %437 = vmatprep.subr.bf16.mxu0 0
    %438 = vmatpush2.bf16.msra.mxu0 0
    %439 = vmatprep.subr.bf16.mxu0 0
    %440 = vmatpush2.bf16.msra.mxu0 0
    %441 = vmatprep.subr.bf16.mxu0 0
    %442 = vmatpush2.bf16.msra.mxu0 0
    %443 = vmatprep.subr.bf16.mxu0 0
    %444 = vmatpush2.bf16.msra.mxu0 0
    %445 = vmatprep.subr.bf16.mxu0 0
    %446 = vmatpush2.bf16.msra.mxu0 0
    %447 = vmatprep.subr.bf16.mxu0 0
    %448 = vmatpush2.bf16.msra.mxu0 0
    %449 = vmatprep.subr.bf16.mxu0 0
    %450 = vmatpush2.bf16.msra.mxu0 0
    %451 = vmatprep.mubr.bf16.mxu0 0
    %452 = vmatmul.mubr.bf16.gmra.mxu0 %v417
    %v453 = vpop.f32.mrf.mxu0
    %v454 = vadd.f32 %v390, %v453
    %v455 = vpop.f32.mrf.mxu0
    %v456 = vpop.f32.mrf.mxu0
    %v457 = vpop.f32.mrf.mxu0
    %458 = vdwg.mxu0
    %v459 = vadd.f32 %v312, %v454
    %v460 = vld [vmem:[#allocation7 + $0x30] sm:$0xff]
    %v461 = vld [vmem:[#allocation7 + $0x38] sm:$0xff]
    %v462 = vsel %vm76, %v459, 0.0
    %463 = vadd.xlane.f32.xlu0 %v462
    %v464 = vpop.xlane.xlu0 %463
    %v465 = vmul.f32 %v464, %v300
    %v466 = vsub.f32 %v459, %v465
    %v467 = vmul.f32 %v466, %v466
    %v468 = vsel %vm76, %v467, 0.0
    %469 = vadd.xlane.f32.xlu0 %v468
    %v470 = vpop.xlane.xlu0 %469
    %v471 = vmul.f32 %v470, %v300
    %v472 = vadd.f32 %v471, 1e-05
    %v473 = vrsqrt.pop %v472
    %v474 = vmul.f32 %v466, %v473
    %v475 = vmul.f32 %v474, %v460
    %v476 = vadd.f32 %v475, %v461
    %v477 = vxor.u32 %v476, 2147483648
    %v478 = vmul.f32 %v477, 1.442695
    %v479 = vpow.pop %v478
    %v480 = vadd.f32 %v479, 1.0
    %v481 = vrcp.pop %v480
    %v482 = vmul.f32 1.0, %v481
    %v483 = vmul.f32 %v476, %v482
    %v484 = vadd.f32 %v483, %v57
    %v485 = vpack.c.bf16 %v484, %v484
    %v486 = vld [vmem:[#allocation5 + $0x50] sm:$0xf]
    %v487 = vld [vmem:[#allocation5 + $0x54] sm:$0xf]
    %v488 = vld [vmem:[#allocation5 + $0x58] sm:$0xf]
    %v489 = vld [vmem:[#allocation5 + $0x5c] sm:$0xf]
    %v490 = vld [vmem:[#allocation7 + $0x40] sm:$0xff]
    %v495 = vunpack.c.l.b16 %v486
    %v496 = vunpack.c.l.b16 %v487
    %v497 = vunpack.c.l.b16 %v488
    %v498 = vunpack.c.l.b16 %v489
    %v499 = vpack.c.b16 %v496, %v495
    %v500 = vpack.c.b16 %v498, %v497
    %v504 = vsel %vm76, %v485, 0
    %506 = vmatprep.subr.bf16.mxu0 0
    %507 = vmatpush1.bf16.msra.mxu0 0
    %508 = vmatprep.subr.bf16.mxu0 0
    %509 = vmatpush1.bf16.msra.mxu0 0
    %510 = vmatprep.subr.bf16.mxu0 0
    %511 = vmatpush1.bf16.msra.mxu0 0
    %512 = vmatprep.subr.bf16.mxu0 0
    %513 = vmatpush1.bf16.msra.mxu0 0
    %514 = vmatprep.subr.bf16.mxu0 0
    %515 = vmatpush1.bf16.msra.mxu0 0
    %516 = vmatprep.subr.bf16.mxu0 0
    %517 = vmatpush1.bf16.msra.mxu0 0
    %518 = vmatprep.subr.bf16.mxu0 0
    %519 = vmatpush1.bf16.msra.mxu0 %v500
    %520 = vmatprep.subr.bf16.mxu0 0
    %521 = vmatpush1.bf16.msra.mxu0 %v499
    %522 = vmatprep.subr.bf16.mxu0 0
    %523 = vmatpush2.bf16.msra.mxu0 0
    %524 = vmatprep.subr.bf16.mxu0 0
    %525 = vmatpush2.bf16.msra.mxu0 0
    %526 = vmatprep.subr.bf16.mxu0 0
    %527 = vmatpush2.bf16.msra.mxu0 0
    %528 = vmatprep.subr.bf16.mxu0 0
    %529 = vmatpush2.bf16.msra.mxu0 0
    %530 = vmatprep.subr.bf16.mxu0 0
    %531 = vmatpush2.bf16.msra.mxu0 0
    %532 = vmatprep.subr.bf16.mxu0 0
    %533 = vmatpush2.bf16.msra.mxu0 0
    %534 = vmatprep.subr.bf16.mxu0 0
    %535 = vmatpush2.bf16.msra.mxu0 0
    %536 = vmatprep.subr.bf16.mxu0 0
    %537 = vmatpush2.bf16.msra.mxu0 0
    %538 = vmatprep.mubr.bf16.mxu0 0
    %539 = vmatmul.mubr.bf16.gmra.mxu0 %v504
    %v540 = vpop.f32.mrf.mxu0
    %v541 = vadd.f32 %v490, %v540
    %v542 = vpop.f32.mrf.mxu0
    %v543 = vpop.f32.mrf.mxu0
    %v544 = vpop.f32.mrf.mxu0
    %545 = vdwg.mxu0
    %546 = vst [vmem:[#allocation8] sm:$0xff] %v541
    // Predicated region
    $region26: #{fwd.1} parent=1 // pred_check
      _
    $region27: #{fwd.1} parent=1 // pred_check_branch
      %548 = sbr.rel (0) target = $region29
    $region28: #{fwd.1} parent=1 // pred_region
      %s550 = ssub.s32 128, 128
      %551 = vsyncadd [#allocation4], %s550
      %s553 = sshll.u32 [#allocation8], 4
      %s554 = int_to_ptr.vmem [resolvable:$true] %s553
      %556 = dma.vmem_to_hbm [thread:$0]  %s554, 128, %s3, [#allocation4]
    $region29: #{fwd.1} parent=1 // pred_fallthru
      _
    // Predicated region
    $region30: #{fwd.1} parent=1 // pred_check
      _
    $region31: #{fwd.1} parent=1 // pred_check_branch
      %558 = sbr.rel (0) target = $region33
    $region32: #{fwd.1} parent=1 // pred_region
      %559 = dma.done [#allocation4], 128
    $region33: #{fwd.1} parent=1 // pred_fallthru
      _
    %560 = vsyncpa [#allocation3], 1
    %561 = vsyncpa [#allocation6], 1
    %562 = vsyncpa [#allocation4], 1

</llo_original>
